<compile_context>
chip_gen: v7x
topology: tpu7x:2x2x1
jax: 0.10.0
libtpu: 0.0.40
codegen_flags: <defaults>
</compile_context>

<pallas_src>
import jax
import jax.numpy as jnp
from jax.experimental import pallas as pl
from jax.experimental.pallas import tpu as pltpu


def _matmul_bn_kernel(w_ref, x_ref, o_ref, acc_ref):
    # w_ref:   [Cout_p, TK]  BN scale folded into weights; BN shift lives in
    #                        the extra "ones" column of the augmented matmul.
    # x_ref:   [TK, TM]      im2col patches (+ ones row), one lane tile of M.
    # o_ref:   [Cout_p, TM]  lane-dense output tile (full-lane stores).
    # acc_ref: [Cout_p, TM]  f32 accumulator, resident across the K axis.
    k = pl.program_id(1)

    @pl.when(k == 0)
    def _():
        acc_ref[...] = jnp.zeros_like(acc_ref)

    acc_ref[...] += jnp.dot(w_ref[...], x_ref[...],
                            preferred_element_type=jnp.float32)

    @pl.when(k == pl.num_programs(1) - 1)
    def _():
        o_ref[...] = acc_ref[...].astype(o_ref.dtype)


def _round_up(x, m):
    return ((x + m - 1) // m) * m


def basic_conv2d(x_nchw, w_oihw, gamma, beta, running_mean, running_var, *,
                 stride=1, padding=0, dilation=1, eps=1e-5,
                 compute_dtype=jnp.bfloat16, lane_tile=512, k_tile=512):
    """Conv2d(bias=False) + eval-mode BatchNorm2d, NCHW in / NCHW out.

    compute_dtype=jnp.bfloat16 (default) halves HBM traffic on the DMA-bound
    patch stream and uses the MXU's native bf16 path; accumulation is f32.
    Pass compute_dtype=jnp.float32 for bit-tight numerics.
    """
    N, Cin, H, W = x_nchw.shape
    Cout, Cin_w, KH, KW = w_oihw.shape
    assert Cin == Cin_w
    Ho = (H + 2 * padding - dilation * (KH - 1) - 1) // stride + 1
    Wo = (W + 2 * padding - dilation * (KW - 1) - 1) // stride + 1

    # ---------------- wrapper-side layout (plain XLA) ----------------
    # Cast to compute dtype BEFORE im2col so the materialized patch array in
    # HBM is already half-width on the bf16 path.
    xp = jnp.pad(x_nchw, ((0, 0), (0, 0), (padding, padding),
                          (padding, padding))).astype(compute_dtype)

    taps = []
    for kh in range(KH):
        for kw in range(KW):
            h0, w0 = kh * dilation, kw * dilation
            taps.append(xp[:, :,
                           h0: h0 + (Ho - 1) * stride + 1: stride,
                           w0: w0 + (Wo - 1) * stride + 1: stride])
    K = KH * KW * Cin
    M = N * Ho * Wo
    # [KH*KW, N, Cin, Ho, Wo] -> [KH*KW, Cin, N, Ho, Wo] -> [K, M]
    patches = jnp.stack(taps, axis=0).transpose(0, 2, 1, 3, 4).reshape(K, M)
    # Fold the BN shift into the matmul: ones row in patches, shift column in W.
    patches = jnp.concatenate(
        [patches, jnp.ones((1, M), dtype=compute_dtype)], axis=0)
    K += 1

    # Eval-mode BN -> per-channel scale/shift; scale folded into the weights.
    inv_std = 1.0 / jnp.sqrt(running_var.astype(jnp.float32) + eps)
    scale = gamma.astype(jnp.float32) * inv_std                       # [Cout]
    shift = beta.astype(jnp.float32) - running_mean.astype(jnp.float32) * scale

    # Weight: OIHW -> [Cout, KH, KW, Cin] -> [Cout, K-1], then append shift col.
    w_flat = w_oihw.transpose(0, 2, 3, 1).reshape(Cout, KH * KW * Cin)
    w_flat = w_flat.astype(jnp.float32) * scale[:, None]
    w_flat = jnp.concatenate([w_flat, shift[:, None]], axis=1)        # [Cout, K]
    w_flat = w_flat.astype(compute_dtype)

    # ---------------- TPU-friendly padding / tiling ----------------
    itemsize = jnp.dtype(compute_dtype).itemsize
    sub = 16 if itemsize == 2 else 8          # bf16 packs 2 rows per sublane
    Cout_p = _round_up(Cout, sub)

    # Lane (M) tile: keep at least 2 tiles so the "parallel" axis shards
    # across v7x's two TensorCores; shrink toward 128 for small M.
    TM = max(128, lane_tile)
    while TM > 128 and _round_up(M, TM) // TM < 2:
        TM //= 2
    TM = max(TM, 128)
    M_p = _round_up(M, TM)

    # Reduction (K) tile: decouples the lane tile from Cin*KH*KW.
    TK = min(_round_up(k_tile, sub), _round_up(K, sub))
    K_p = _round_up(K, TK)

    patches = jnp.pad(patches, ((0, K_p - K), (0, M_p - M)))
    w_flat = jnp.pad(w_flat, ((0, Cout_p - Cout), (0, K_p - K)))

    # Double-buffered footprint + single-buffered f32 accumulator + slack.
    vmem_bytes = (itemsize * (2 * TK * TM + 2 * Cout_p * TK + 2 * Cout_p * TM)
                  + 4 * Cout_p * TM + (2 << 20))
    vmem_limit = int(min(max(vmem_bytes, 32 << 20), 64 << 20))

    grid = (M_p // TM, K_p // TK)
    out_flat = pl.pallas_call(
        _matmul_bn_kernel,
        out_shape=jax.ShapeDtypeStruct((Cout_p, M_p), x_nchw.dtype),
        grid=grid,
        in_specs=[
            pl.BlockSpec((Cout_p, TK), lambda m, k: (0, k)),   # weight K tile
            pl.BlockSpec((TK, TM), lambda m, k: (k, m)),       # patch tile
        ],
        out_specs=pl.BlockSpec((Cout_p, TM), lambda m, k: (0, m)),
        scratch_shapes=[pltpu.VMEM((Cout_p, TM), jnp.float32)],
        compiler_params=pltpu.CompilerParams(
            dimension_semantics=("parallel", "arbitrary"),
            vmem_limit_bytes=vmem_limit),
    )(w_flat, patches)

    # [Cout, M] -> [Cout, N, Ho, Wo] -> NCHW (cheap wrapper-side metadata ops)
    out = out_flat[:Cout, :M].reshape(Cout, N, Ho, Wo)
    return jnp.transpose(out, (1, 0, 2, 3))


def _reference(x_nchw, w_oihw, gamma, beta, running_mean, running_var, *,
               stride, padding, dilation, eps=1e-5):
    conv = jax.lax.conv_general_dilated(
        x_nchw, w_oihw,
        window_strides=(stride, stride),
        padding=[(padding, padding), (padding, padding)],
        rhs_dilation=(dilation, dilation),
        dimension_numbers=("NCHW", "OIHW", "NCHW"))
    s = (gamma / jnp.sqrt(running_var + eps)).reshape(1, -1, 1, 1)
    b = (beta - running_mean * gamma / jnp.sqrt(running_var + eps)).reshape(1, -1, 1, 1)
    return conv * s + b


if __name__ == "__main__":
    # Module config: BasicConv2d(in_planes=4, out_planes=8, kernel_size=3,
    #                            stride=1, padding=1, dilation=1)
    in_planes, out_planes, ksize, stride, padding, dilation = 4, 8, 3, 1, 1, 1
    N, H, W = 2, 16, 16

    key = jax.random.PRNGKey(0)
    kx, kw, kg, kb, km, kv = jax.random.split(key, 6)

    x = jax.random.normal(kx, (N, in_planes, H, W), dtype=jnp.float32)
    # Conv2d weight (bias=False): [out, in, kh, kw]
    weight = jax.random.normal(kw, (out_planes, in_planes, ksize, ksize),
                               dtype=jnp.float32) * 0.1
    # BatchNorm2d parameters / running stats (deterministic, non-trivial)
    gamma = 1.0 + 0.1 * jax.random.normal(kg, (out_planes,), dtype=jnp.float32)
    beta = 0.1 * jax.random.normal(kb, (out_planes,), dtype=jnp.float32)
    running_mean = 0.05 * jax.random.normal(km, (out_planes,), dtype=jnp.float32)
    running_var = 1.0 + 0.1 * jax.random.uniform(kv, (out_planes,), dtype=jnp.float32)

    y_ref = _reference(x, weight, gamma, beta, running_mean, running_var,
                       stride=stride, padding=padding, dilation=dilation)

    # Default fast path: bf16 patches/weights, f32 MXU accumulation.
    y_bf16 = basic_conv2d(x, weight, gamma, beta, running_mean, running_var,
                          stride=stride, padding=padding, dilation=dilation,
                          compute_dtype=jnp.bfloat16)
    y_bf16 = jax.block_until_ready(y_bf16)
    assert y_bf16.shape == (N, out_planes, H, W)
    assert jnp.allclose(y_bf16, y_ref, atol=5e-2, rtol=5e-2), \
        "bf16 path mismatch vs reference"

    # f32 path: verifies the kernel structure at tight tolerance.
    y_f32 = basic_conv2d(x, weight, gamma, beta, running_mean, running_var,
                         stride=stride, padding=padding, dilation=dilation,
                         compute_dtype=jnp.float32)
    y_f32 = jax.block_until_ready(y_f32)
    assert jnp.allclose(y_f32, y_ref, atol=1e-4, rtol=1e-4), \
        "f32 path mismatch vs reference"

    print("KERNEL_OK")
</pallas_src>

<mosaic_0001>
module attributes {stable_mosaic.version = 11 : i64} {
  func.func @_matmul_bn_kernel(%arg0: i32, %arg1: i32, %arg2: memref<16x48xbf16, #tpu.memory_space<vmem>>, %arg3: memref<48x256xbf16, #tpu.memory_space<vmem>>, %arg4: memref<16x256xf32, #tpu.memory_space<vmem>>, %arg5: memref<16x256xf32, #tpu.memory_space<vmem>>) attributes {dimension_semantics = [#tpu.dimension_semantics<parallel>, #tpu.dimension_semantics<arbitrary>], iteration_bounds = array<i64: 2, 1>, scalar_prefetch = 0 : i64, scratch_operands = 1 : i64, tpu.core_type = #tpu.core_type<tc>, window_params = [{transform_indices = @transform_0, window_bounds = array<i64: 16, 48>}, {transform_indices = @transform_1, window_bounds = array<i64: 48, 256>}, {transform_indices = @transform_2, window_bounds = array<i64: 16, 256>}]} {
    %c0_i32 = arith.constant 0 : i32
    %0 = arith.cmpi eq, %arg1, %c0_i32 : i32
    %1 = arith.extui %0 : i1 to i32
    %c0_i32_0 = arith.constant 0 : i32
    %2 = arith.cmpi ne, %1, %c0_i32_0 : i32
    scf.if %2 {
      %cst_10 = arith.constant 0.000000e+00 : f32
      %12 = vector.broadcast %cst_10 : f32 to vector<16x256xf32>
      %c0_11 = arith.constant 0 : index
      %c0_12 = arith.constant 0 : index
      %13 = vector.load %arg5[%c0_11, %c0_12] : memref<16x256xf32, #tpu.memory_space<vmem>>, vector<16x256xf32>
      tpu.vector_store %arg5[%c0_11, %c0_12], %12 {strides = array<i32>} : memref<16x256xf32, #tpu.memory_space<vmem>>, vector<16x256xf32>,
    } else {
    }
    %c0 = arith.constant 0 : index
    %c0_1 = arith.constant 0 : index
    %3 = vector.load %arg5[%c0, %c0_1] : memref<16x256xf32, #tpu.memory_space<vmem>>, vector<16x256xf32>
    %c0_2 = arith.constant 0 : index
    %c0_3 = arith.constant 0 : index
    %4 = vector.load %arg2[%c0_2, %c0_3] : memref<16x48xbf16, #tpu.memory_space<vmem>>, vector<16x48xbf16>
    %c0_4 = arith.constant 0 : index
    %c0_5 = arith.constant 0 : index
    %5 = vector.load %arg3[%c0_4, %c0_5] : memref<48x256xbf16, #tpu.memory_space<vmem>>, vector<48x256xbf16>
    %cst = arith.constant dense<0.000000e+00> : vector<16x256xf32>
    %6 = tpu.matmul %4, %5, %cst {dimension_numbers = #tpu.dot_dimension_numbers<[1], [0], [0], [1], [0, 0, 1, 1], [], []>} : vector<16x48xbf16>, vector<48x256xbf16>, vector<16x256xf32> -> vector<16x256xf32>
    %7 = arith.addf %3, %6 : vector<16x256xf32>
    %c0_6 = arith.constant 0 : index
    %c0_7 = arith.constant 0 : index
    %8 = vector.load %arg5[%c0_6, %c0_7] : memref<16x256xf32, #tpu.memory_space<vmem>>, vector<16x256xf32>
    tpu.vector_store %arg5[%c0_6, %c0_7], %7 {strides = array<i32>} : memref<16x256xf32, #tpu.memory_space<vmem>>, vector<16x256xf32>,
    %c0_i32_8 = arith.constant 0 : i32
    %9 = arith.cmpi eq, %arg1, %c0_i32_8 : i32
    %10 = arith.extui %9 : i1 to i32
    %c0_i32_9 = arith.constant 0 : i32
    %11 = arith.cmpi ne, %10, %c0_i32_9 : i32
    scf.if %11 {
      %c0_10 = arith.constant 0 : index
      %c0_11 = arith.constant 0 : index
      %12 = vector.load %arg5[%c0_10, %c0_11] : memref<16x256xf32, #tpu.memory_space<vmem>>, vector<16x256xf32>
      %c0_12 = arith.constant 0 : index
      %c0_13 = arith.constant 0 : index
      %13 = vector.load %arg4[%c0_12, %c0_13] : memref<16x256xf32, #tpu.memory_space<vmem>>, vector<16x256xf32>
      tpu.vector_store %arg4[%c0_12, %c0_13], %12 {strides = array<i32>} : memref<16x256xf32, #tpu.memory_space<vmem>>, vector<16x256xf32>,
    } else {
    }
    return
  }
  func.func @transform_0(%arg0: i32, %arg1: i32) -> (i32, i32) {
    %c0_i32 = arith.constant 0 : i32
    %c0_i32_0 = arith.constant 0 : i32
    return %c0_i32, %arg1 : i32, i32
  }
  func.func @transform_1(%arg0: i32, %arg1: i32) -> (i32, i32) {
    %c0_i32 = arith.constant 0 : i32
    return %arg1, %arg0 : i32, i32
  }
  func.func @transform_2(%arg0: i32, %arg1: i32) -> (i32, i32) {
    %c0_i32 = arith.constant 0 : i32
    %c0_i32_0 = arith.constant 0 : i32
    return %c0_i32, %arg0 : i32, i32
  }
}

</mosaic_0001>

<llo_original>
// kernel: tpu_custom_call.1
$region0: #{tpu_custom_call.1}
  #allocation0 [shape = 'u32[]', space=smem, size = 0x4, offset = 0x4, fixed_abs, tag = 'smem constant byte address 0x4 - core index']
  #allocation1 [shape = 'u32[144,128]{1,0:T(1,128)}', space=vmem, size = 0x12000, scoped, tag = 'internal scratch']
  #allocation2 [shape = 'f32[16,256]{1,0:T(8,128)}', space=vmem, size = 0x4000, scoped, tag = 'scratch operand']
  %s0 = inlined_call_operand.hbm [shape: bf16[16,48], index: 0, kind: input, shape index: {}]
  %s1 = inlined_call_operand.hbm [shape: bf16[48,512], index: 1, kind: input, shape index: {}]
  %s2 = inlined_call_operand.hbm [shape: f32[16,512], index: 2, kind: output, shape index: {}]
  %s3 = sld [smem:[#allocation0]]
  $region57: #{tpu_custom_call.1} parent=0
    _
  %s5 = ssub.s32 1, %s3
  %s6 = scalar_select 0, %s5, %s3
  $region1: #{tpu_custom_call.1} parent=0
    #allocation3 [shape = 'u8[4096]{0}', space=vmem, size = 0x1000, scoped, tag = 'input window, operand 0, single buffered']
    #allocation4 [shape = 's32[2]{0}', space=sflag, size = 0x8, scoped, tag = 'scoped memory for tpu_custom_call.1']
    #allocation5 [shape = 's32[2]{0}', space=sflag, size = 0x8, scoped, tag = 'scoped memory for tpu_custom_call.1']
    #allocation6 [shape = 'u8[49152]{0}', space=vmem, size = 0xc000, scoped, tag = 'input window, operand 1']
    #allocation7 [shape = 's32[2]{0}', space=sflag, size = 0x8, scoped, tag = 'scoped memory for tpu_custom_call.1']
    #allocation8 [shape = 'u8[32768]{0}', space=vmem, size = 0x8000, scoped, tag = 'output window, operand 0']
    %7 = vsyncpa [#allocation4], 0
    %8 = vsyncpa [#allocation7], 0
    %s9 = scalar_lea.sflag [#allocation7], 1
    %10 = vsyncpa %s9, 0
    %11 = vsyncpa [#allocation5], 0
    %s12 = scalar_lea.sflag [#allocation5], 1
    %13 = vsyncpa %s12, 0
    loop: start=0, step=1, limit=4
    $region2: #{tpu_custom_call.1} parent=1 // loop_pre_header
      _
    $region3: #{tpu_custom_call.1} parent=1 // loop_header
      %s15 = sphi 0, %s19
      %p16 = scmp.ge.s32.totalorder %s15, 4
      %s22 = sphi 0, %s34
      %s23 = sphi 0, %s30
      %s24 = sphi 0, %s22
      %s25 = sphi 0, %s23
      %s26 = sphi 0, %s24
      %s27 = sphi 0, %s25
      %s37 = sphi 0, %s39
      %s40 = sphi 0, %s37
      %s41 = sphi 0, %s40
      %s57 = sphi 0, %s41
      %s65 = sphi 0, %s67
      %s68 = sphi 0, %s65
      %s69 = sphi 0, %s68
      %s85 = sphi 0, %s69
      %s91 = sphi 0, %s93
      %s94 = sphi 0, %s91
      %s95 = sphi 0, %s94
      %s111 = sphi 0, %s95
    $region4: #{tpu_custom_call.1} parent=1 // loop_header_branch
      %18 = sbr.rel (%p16) target = $region8
    $region5: #{tpu_custom_call.1} parent=1 // loop_body
      %s20 = ssub.s32 %s15, 1
      %s21 = ssub.s32 %s15, 2
      %s28 = sadd.s32 1, %s23
      %p29 = scmp.ge.s32.totalorder %s28, 1
      %s30 = scalar_select %p29, 0, %s28
      %s31 = sadd.s32 1, %s22
      %s32 = scalar_select %p29, %s31, %s22
      %p33 = scmp.ge.s32.totalorder %s32, 2
      %s34 = scalar_select %p33, 0, %s32
      %s35 = ssub.s32 %s23, %s30
      %p36 = scmp.eq.s32.totalorder %s35, 0
      %s38 = sadd.s32 %s37, 1
      %s39 = scalar_select %p36, %s37, %s38
      %p42 = pneg %p36
      %p43 = scmp.eq.s32.totalorder %s15, 1
      %p44 = por %p42, %p43
      %p45 = scmp.ne.s32.totalorder %s37, %s40
      %p46 = scmp.eq.s32.totalorder %s15, 0
      %p47 = por %p45, %p46
      %p48 = scmp.ne.s32.totalorder %s37, %s40
      %p49 = scmp.eq.s32.totalorder %s20, 1
      %p50 = por %p48, %p49
      %p51 = scmp.ne.s32.totalorder %s40, %s41
      %p52 = scmp.eq.s32.totalorder %s20, 0
      %p53 = por %p51, %p52
      %p54 = scmp.ne.s32.totalorder %s40, %s41
      %p55 = scmp.eq.s32.totalorder %s21, 1
      %p56 = por %p54, %p55
      %p58 = scmp.ne.s32.totalorder %s41, %s57
      %p59 = scmp.eq.s32.totalorder %s21, 0
      %p60 = por %p58, %p59
      %s61 = ssub.s32 %s23, %s30
      %s62 = ssub.s32 %s22, %s34
      %s63 = sor.u32 %s61, %s62
      %p64 = scmp.eq.s32.totalorder %s63, 0
      %s66 = sadd.s32 %s65, 1
      %s67 = scalar_select %p64, %s65, %s66
      %p70 = pneg %p64
      %p71 = scmp.eq.s32.totalorder %s15, 1
      %p72 = por %p70, %p71
      %p73 = scmp.ne.s32.totalorder %s65, %s68
      %p74 = scmp.eq.s32.totalorder %s15, 0
      %p75 = por %p73, %p74
      %p76 = scmp.ne.s32.totalorder %s65, %s68
      %p77 = scmp.eq.s32.totalorder %s20, 1
      %p78 = por %p76, %p77
      %p79 = scmp.ne.s32.totalorder %s68, %s69
      %p80 = scmp.eq.s32.totalorder %s20, 0
      %p81 = por %p79, %p80
      %p82 = scmp.ne.s32.totalorder %s68, %s69
      %p83 = scmp.eq.s32.totalorder %s21, 1
      %p84 = por %p82, %p83
      %p86 = scmp.ne.s32.totalorder %s69, %s85
      %p87 = scmp.eq.s32.totalorder %s21, 0
      %p88 = por %p86, %p87
      %s89 = ssub.s32 %s22, %s34
      %p90 = scmp.eq.s32.totalorder %s89, 0
      %s92 = sadd.s32 %s91, 1
      %s93 = scalar_select %p90, %s91, %s92
      %p96 = pneg %p90
      %p97 = scmp.eq.s32.totalorder %s15, 1
      %p98 = por %p96, %p97
      %p99 = scmp.ne.s32.totalorder %s91, %s94
      %p100 = scmp.eq.s32.totalorder %s15, 0
      %p101 = por %p99, %p100
      %p102 = scmp.ne.s32.totalorder %s91, %s94
      %p103 = scmp.eq.s32.totalorder %s20, 1
      %p104 = por %p102, %p103
      %p105 = scmp.ne.s32.totalorder %s94, %s95
      %p106 = scmp.eq.s32.totalorder %s20, 0
      %p107 = por %p105, %p106
      %p108 = scmp.ne.s32.totalorder %s94, %s95
      %p109 = scmp.eq.s32.totalorder %s21, 1
      %p110 = por %p108, %p109
      %p112 = scmp.ne.s32.totalorder %s95, %s111
      %p113 = scmp.eq.s32.totalorder %s21, 0
      %p114 = por %p112, %p113
      %p115 = scmp.le.s32.totalorder 1, %s15
      %p116 = scmp.lt.s32.totalorder %s15, 3
      %p117 = pnand %p115, %p116
      %p118 = pneg %p117
      // Predicated region
      $region9: #{tpu_custom_call.1} parent=5 // pred_check
        _
      $region10: #{tpu_custom_call.1} parent=5 // pred_check_branch
        %120 = sbr.rel (%p117) target = $region12
      $region11: #{tpu_custom_call.1} parent=5 // pred_region
        %s121 = ssub.s32 %s15, 1
        // Predicated region
        $region13: #{tpu_custom_call.1} parent=11 // pred_check
          %p122 = pneg %p53
        $region14: #{tpu_custom_call.1} parent=11 // pred_check_branch
          %124 = sbr.rel (%p122) target = $region16
        $region15: #{tpu_custom_call.1} parent=11 // pred_region
          %s126 = ssub.s32 128, 128
          %127 = vsyncadd [#allocation4], %s126
          %s128 = smul.addr %s25, 64
          %s129 = scalar_lea.hbm %s0, %s128
          %s130 = sshll.u32 [#allocation3], 4
          %s131 = int_to_ptr.vmem [resolvable:$true] %s130
          %136 = dma.hbm_to_vmem [thread:$0]  %s129, 128, %s131, [#allocation4], 64, 64, 4
        $region16: #{tpu_custom_call.1} parent=11 // pred_fallthru
          _
      $region12: #{tpu_custom_call.1} parent=5 // pred_fallthru
        _
      %p137 = scmp.lt.s32.totalorder %s15, 2
      // Predicated region
      $region17: #{tpu_custom_call.1} parent=5 // pred_check
        %p138 = pneg %p137
      $region18: #{tpu_custom_call.1} parent=5 // pred_check_branch
        %140 = sbr.rel (%p138) target = $region20
      $region19: #{tpu_custom_call.1} parent=5 // pred_region
        // Predicated region
        $region21: #{tpu_custom_call.1} parent=19 // pred_check
          %p141 = pneg %p75
        $region22: #{tpu_custom_call.1} parent=19 // pred_check_branch
          %143 = sbr.rel (%p141) target = $region24
        $region23: #{tpu_custom_call.1} parent=19 // pred_region
          %s144 = sand.u32 %s65, 1
          %s145 = scalar_lea.sflag [#allocation7], %s144
          %s146 = sand.u32 %s65, 1
          %s147 = smul.addr %s146, 48
          %s148 = scalar_lea.vmem [#allocation6], %s147
          %s149 = smul.u32 6, %s23
          %s150 = smul.u32 2, %s22
          %s152 = ssub.s32 768, 768
          %153 = vsyncadd %s145, %s152
          %s154 = smul.addr %s149, 4
          %s155 = sadd.s32 %s150, %s154
          %s156 = smul.addr %s155, 64
          %s157 = scalar_lea.hbm %s1, %s156
          %s158 = sshll.u32 %s148, 4
          %s159 = int_to_ptr.vmem [resolvable:$true] %s158
          %164 = dma.hbm_to_vmem [thread:$0]  %s157, 768, %s159, %s145, 256, 128, 8
        $region24: #{tpu_custom_call.1} parent=19 // pred_fallthru
          _
      $region20: #{tpu_custom_call.1} parent=5 // pred_fallthru
        _
      %p165 = scmp.le.s32.totalorder 1, %s15
      %p166 = scmp.lt.s32.totalorder %s15, 3
      %p167 = pnand %p165, %p166
      %p168 = pneg %p167
      // Predicated region
      $region25: #{tpu_custom_call.1} parent=5 // pred_check
        _
      $region26: #{tpu_custom_call.1} parent=5 // pred_check_branch
        %170 = sbr.rel (%p167) target = $region28
      $region27: #{tpu_custom_call.1} parent=5 // pred_region
        %s171 = ssub.s32 %s15, 1
        // Predicated region
        $region29: #{tpu_custom_call.1} parent=27 // pred_check
          %p172 = pneg %p53
        $region30: #{tpu_custom_call.1} parent=27 // pred_check_branch
          %174 = sbr.rel (%p172) target = $region32
        $region31: #{tpu_custom_call.1} parent=27 // pred_region
          %175 = dma.done [#allocation4], 128
        $region32: #{tpu_custom_call.1} parent=27 // pred_fallthru
          _
        %s176 = sand.u32 %s68, 1
        %s177 = scalar_lea.sflag [#allocation7], %s176
        %s178 = sand.u32 %s68, 1
        %s179 = smul.addr %s178, 48
        %s180 = scalar_lea.vmem [#allocation6], %s179
        // Predicated region
        $region33: #{tpu_custom_call.1} parent=27 // pred_check
          %p181 = pneg %p81
        $region34: #{tpu_custom_call.1} parent=27 // pred_check_branch
          %183 = sbr.rel (%p181) target = $region36
        $region35: #{tpu_custom_call.1} parent=27 // pred_region
          %184 = dma.done %s177, 768
        $region36: #{tpu_custom_call.1} parent=27 // pred_fallthru
          _
        %p185 = pneg %p53
        %p186 = pneg %p50
        %s187 = sand.u32 %s68, 1
        %s188 = scalar_lea.sflag [#allocation7], %s187
        %s189 = sand.u32 %s68, 1
        %s190 = smul.addr %s189, 48
        %s191 = scalar_lea.vmem [#allocation6], %s190
        %p192 = pneg %p81
        %p193 = pneg %p78
        %p194 = pneg %p107
        %p195 = pneg %p104
        %s196 = sand.u32 %s94, 1
        %s197 = scalar_lea.sflag [#allocation5], %s196
        %s198 = sand.u32 %s94, 1
        %s199 = smul.addr %s198, 32
        %s200 = scalar_lea.vmem [#allocation8], %s199
        %s201 = smul.u32 6, %s25
        %s202 = smul.u32 2, %s24
        %s203 = smul.u32 2, %s24
        %p205 = scmp.eq.s32.totalorder %s25, 0
        // Predicated region
        $region37: #{tpu_custom_call.1} parent=27 // pred_check
          %p206 = pneg %p205
        $region38: #{tpu_custom_call.1} parent=27 // pred_check_branch
          %208 = sbr.rel (%p206) target = $region40
        $region39: #{tpu_custom_call.1} parent=27 // pred_region
          %209 = vst [vmem:[#allocation2] sm:$0xff] 0.0
          %210 = vst [vmem:[#allocation2 + $0x8] sm:$0xff] 0.0
          %211 = vst [vmem:[#allocation2 + $0x10] sm:$0xff] 0.0
          %212 = vst [vmem:[#allocation2 + $0x18] sm:$0xff] 0.0
        $region40: #{tpu_custom_call.1} parent=27 // pred_fallthru
          _
        %v213 = vld [vmem:[#allocation2] sm:$0xff]
        %v214 = vld [vmem:[#allocation2 + $0x8] sm:$0xff]
        %v215 = vld [vmem:[#allocation2 + $0x10] sm:$0xff]
        %v216 = vld [vmem:[#allocation2 + $0x18] sm:$0xff]
        %v217 = vld [vmem:[#allocation3] sm:$0xf]
        %v218 = vld [vmem:[#allocation3 + $0x4] sm:$0xf]
        %v219 = vld [vmem:[%s180] sm:$0xff]
        %v220 = vld [vmem:[%s180 + $0x8] sm:$0xff]
        %v221 = vld [vmem:[%s180 + $0x10] sm:$0xff]
        %v222 = vld [vmem:[%s180 + $0x18] sm:$0xff]
        %v223 = vld [vmem:[%s180 + $0x20] sm:$0xff]
        %v224 = vld [vmem:[%s180 + $0x28] sm:$0xff]
        %v227 = vunpack.c.l.b16 %v217
        %v228 = vunpack.c.l.b16 %v218
        %v229 = vpack.c.b16 %v228, %v227
        %v236 = vunpack.c.l.b16 %v219
        %v237 = vunpack.c.h.b16 %v219
        %v238 = vunpack.c.l.b16 %v220
        %v239 = vunpack.c.h.b16 %v220
        %v240 = vunpack.c.l.b16 %v221
        %v241 = vunpack.c.h.b16 %v221
        %v242 = vunpack.c.l.b16 %v222
        %v243 = vunpack.c.h.b16 %v222
        %v244 = vunpack.c.l.b16 %v223
        %v245 = vunpack.c.h.b16 %v223
        %v246 = vunpack.c.l.b16 %v224
        %v247 = vunpack.c.h.b16 %v224
        %v248 = vpack.c.b16 %v238, %v236
        %v249 = vpack.c.b16 %v239, %v237
        %v250 = vpack.c.b16 %v242, %v240
        %v251 = vpack.c.b16 %v243, %v241
        %v252 = vpack.c.b16 %v246, %v244
        %v253 = vpack.c.b16 %v247, %v245
        %vm260 = vcmask 392192
        %v262 = vsel %vm260, %v229, 0
        %264 = vmatprep.subr.bf16.mxu0 %v249
        %265 = vmatpush1.bf16.msra.mxu0 %v248
        %266 = vmatprep.subr.bf16.mxu0 %v251
        %267 = vmatpush1.bf16.msra.mxu0 %v250
        %268 = vmatprep.subr.bf16.mxu0 %v253
        %269 = vmatpush1.bf16.msra.mxu0 %v252
        %270 = vmatprep.subr.bf16.mxu0 0
        %271 = vmatpush1.bf16.msra.mxu0 0
        %272 = vmatprep.subr.bf16.mxu0 0
        %273 = vmatpush1.bf16.msra.mxu0 0
        %274 = vmatprep.subr.bf16.mxu0 0
        %275 = vmatpush1.bf16.msra.mxu0 0
        %276 = vmatprep.subr.bf16.mxu0 0
        %277 = vmatpush1.bf16.msra.mxu0 0
        %278 = vmatprep.subr.bf16.mxu0 0
        %279 = vmatpush1.bf16.msra.mxu0 0
        %280 = vmatprep.subr.bf16.mxu0 0
        %281 = vmatpush1.bf16.msra.mxu0 0
        %282 = vmatprep.subr.bf16.mxu0 0
        %283 = vmatpush1.bf16.msra.mxu0 0
        %284 = vmatprep.subr.bf16.mxu0 0
        %285 = vmatpush1.bf16.msra.mxu0 0
        %286 = vmatprep.subr.bf16.mxu0 0
        %287 = vmatpush1.bf16.msra.mxu0 0
        %288 = vmatprep.subr.bf16.mxu0 0
        %289 = vmatpush1.bf16.msra.mxu0 0
        %290 = vmatprep.subr.bf16.mxu0 0
        %291 = vmatpush1.bf16.msra.mxu0 0
        %292 = vmatprep.subr.bf16.mxu0 0
        %293 = vmatpush1.bf16.msra.mxu0 0
        %294 = vmatprep.subr.bf16.mxu0 0
        %295 = vmatpush1.bf16.msra.mxu0 0
        %296 = vmatprep.mubr.bf16.mxu0 0
        %297 = vmatmul.mubr.bf16.gmra.mrb[0].mxu0 %v262
        %v298 = vpop.f32.mrb[0].mxu0
        %v299 = vadd.f32 0.0, %v298
        %v300 = vpop.f32.mrb[0].mxu0
        %v301 = vadd.f32 0.0, %v300
        %v302 = vpop.f32.mrb[0].mxu0
        %v303 = vadd.f32 0.0, %v302
        %v304 = vpop.f32.mrb[0].mxu0
        %v305 = vadd.f32 0.0, %v304
        %306 = vdwg.mxu0
        %v307 = vadd.f32 %v213, %v299
        %v308 = vadd.f32 %v214, %v301
        %v309 = vadd.f32 %v215, %v303
        %v310 = vadd.f32 %v216, %v305
        %311 = vst [vmem:[#allocation2] sm:$0xff] %v307
        %312 = vst [vmem:[#allocation2 + $0x8] sm:$0xff] %v308
        %313 = vst [vmem:[#allocation2 + $0x10] sm:$0xff] %v309
        %314 = vst [vmem:[#allocation2 + $0x18] sm:$0xff] %v310
        // Predicated region
        $region41: #{tpu_custom_call.1} parent=27 // pred_check
          %p315 = pneg %p205
        $region42: #{tpu_custom_call.1} parent=27 // pred_check_branch
          %317 = sbr.rel (%p315) target = $region44
        $region43: #{tpu_custom_call.1} parent=27 // pred_region
          %v318 = vld [vmem:[#allocation2] sm:$0xff]
          %v319 = vld [vmem:[#allocation2 + $0x8] sm:$0xff]
          %v320 = vld [vmem:[#allocation2 + $0x10] sm:$0xff]
          %v321 = vld [vmem:[#allocation2 + $0x18] sm:$0xff]
          %322 = vst [vmem:[%s200] sm:$0xff] %v318
          %323 = vst [vmem:[%s200 + $0x8] sm:$0xff] %v319
          %324 = vst [vmem:[%s200 + $0x10] sm:$0xff] %v320
          %325 = vst [vmem:[%s200 + $0x18] sm:$0xff] %v321
        $region44: #{tpu_custom_call.1} parent=27 // pred_fallthru
          _
        %s326 = sand.u32 %s94, 1
        %s327 = scalar_lea.sflag [#allocation5], %s326
        %s328 = sand.u32 %s94, 1
        %s329 = smul.addr %s328, 32
        %s330 = scalar_lea.vmem [#allocation8], %s329
        // Predicated region
        $region45: #{tpu_custom_call.1} parent=27 // pred_check
          %p331 = pneg %p104
        $region46: #{tpu_custom_call.1} parent=27 // pred_check_branch
          %333 = sbr.rel (%p331) target = $region48
        $region47: #{tpu_custom_call.1} parent=27 // pred_region
          %s334 = smul.u32 2, %s24
          %s336 = ssub.s32 512, 512
          %337 = vsyncadd %s327, %s336
          %s338 = smul.addr %s334, 128
          %s339 = scalar_lea.hbm %s2, %s338
          %s340 = sshll.u32 %s330, 4
          %s341 = int_to_ptr.vmem [resolvable:$true] %s340
          %346 = dma.vmem_to_hbm [thread:$0]  %s341, 512, %s339, %s327, 256, 512, 16
        $region48: #{tpu_custom_call.1} parent=27 // pred_fallthru
          _
      $region28: #{tpu_custom_call.1} parent=5 // pred_fallthru
        _
      %p347 = scmp.le.s32.totalorder 2, %s15
      // Predicated region
      $region49: #{tpu_custom_call.1} parent=5 // pred_check
        %p348 = pneg %p347
      $region50: #{tpu_custom_call.1} parent=5 // pred_check_branch
        %350 = sbr.rel (%p348) target = $region52
      $region51: #{tpu_custom_call.1} parent=5 // pred_region
        %s351 = ssub.s32 %s15, 2
        // Predicated region
        $region53: #{tpu_custom_call.1} parent=51 // pred_check
          %p352 = pneg %p110
        $region54: #{tpu_custom_call.1} parent=51 // pred_check_branch
          %354 = sbr.rel (%p352) target = $region56
        $region55: #{tpu_custom_call.1} parent=51 // pred_region
          %s355 = sand.u32 %s95, 1
          %s356 = scalar_lea.sflag [#allocation5], %s355
          %s357 = sand.u32 %s95, 1
          %s358 = smul.addr %s357, 32
          %s359 = scalar_lea.vmem [#allocation8], %s358
          %360 = dma.done %s356, 512
        $region56: #{tpu_custom_call.1} parent=51 // pred_fallthru
          _
      $region52: #{tpu_custom_call.1} parent=5 // pred_fallthru
        _
    $region6: #{tpu_custom_call.1} parent=1 // loop_footer
      %s19 = sadd.s32 1, %s15
    $region7: #{tpu_custom_call.1} parent=1 // loop_footer_branch
      %14 = sbr.rel target = $region3
    $region8: #{tpu_custom_call.1} parent=1 // loop_exit
      _
    %361 = vsyncpa [#allocation4], 1
    %s362 = scalar_lea.sflag [#allocation4], 1
    %363 = vsyncpa %s362, 1
    %364 = vsyncpa [#allocation7], 1
    %s365 = scalar_lea.sflag [#allocation7], 1
    %366 = vsyncpa %s365, 1
    %367 = vsyncpa [#allocation5], 1
    %s368 = scalar_lea.sflag [#allocation5], 1
    %369 = vsyncpa %s368, 1

</llo_original>
